<compile_context>
chip_gen: v5e
topology: v5e:2x2
jax: 0.10.0
libtpu: 0.0.40
codegen_flags: <defaults>
</compile_context>

<pallas_src>
import jax
import jax.numpy as jnp
from jax.experimental import pallas as pl
from jax.experimental.pallas import tpu as pltpu


def mlp3_kernel(x_ref, w1_ref, b1_ref, w2_ref, b2_ref, w3_ref, b3_ref, o_ref):
    # Layer 1: Linear(input_size -> H1) + ReLU (f32 accumulate + f32 epilogue).
    h1 = jnp.dot(x_ref[...], w1_ref[...], preferred_element_type=jnp.float32)
    h1 = jnp.maximum(h1 + b1_ref[...], 0.0)

    # Layer 2: Linear(H1 -> H2) + ReLU.  Feed the MXU in the weight dtype (bf16 on
    # v6e/v7x), accumulate in f32.
    h1 = h1.astype(w2_ref.dtype)
    h2 = jnp.dot(h1, w2_ref[...], preferred_element_type=jnp.float32)
    h2 = jnp.maximum(h2 + b2_ref[...], 0.0)                      # (tile_m, H2) f32

    # Layer 3: Linear(H2 -> 1).  N=1 matmul wastes the MXU, so do it on the
    # VPU (broadcast multiply) + XLU (lane reduce) and store a lane-dense row.
    w3_row = w3_ref[...]                                          # (1, H2) f32
    out_vec = jnp.sum(h2 * w3_row, axis=-1)                       # (tile_m,)
    o_ref[...] = (out_vec.reshape(1, -1) + b3_ref[...]).astype(o_ref.dtype)


def three_layer_classifier(x, params, *, tile_m=None, mxu_dtype=jnp.float32):
    """x: [B, input_size] f32.  params: dict with pre-transposed weights/biases.

    tile_m=None picks a tile automatically:
      - B <= 512: single grid step over the whole (padded-to-8) batch.
      - else:     256-row tiles (fills a v6e/v7x MXU pass; multiple of 128 for v5e).
    """
    w1, b1, w2, b2, w3, b3 = (params["w1"], params["b1"], params["w2"],
                              params["b2"], params["w3"], params["b3"])
    B, D_in = x.shape
    H1 = w1.shape[1]
    H2 = w2.shape[1]

    if tile_m is None:
        tile_m = max(8, ((B + 7) // 8) * 8) if B <= 512 else 256

    # Pad the batch instead of asserting divisibility; padded rows are dropped below.
    B_pad = ((B + tile_m - 1) // tile_m) * tile_m
    x_pad = jnp.pad(x, ((0, B_pad - B), (0, 0))) if B_pad != B else x
    num_tiles = B_pad // tile_m

    # MXU inputs (x, W1, W2) optionally bf16; biases / W3 / epilogues stay f32.
    x_in = x_pad.astype(mxu_dtype)
    w1_in = w1.astype(mxu_dtype)
    w2_in = w2.astype(mxu_dtype)

    full = lambda i: (0, 0)  # weights/biases resident in VMEM across the batch grid

    out_row = pl.pallas_call(
        mlp3_kernel,
        # Lane-dense output slab [1, B_pad]; reshaped to (B, 1) below.
        out_shape=jax.ShapeDtypeStruct((1, B_pad), jnp.float32),
        grid_spec=pltpu.PrefetchScalarGridSpec(
            num_scalar_prefetch=0,
            grid=(num_tiles,),
            in_specs=[
                pl.BlockSpec((tile_m, D_in), lambda i: (i, 0)),  # x tile
                pl.BlockSpec((D_in, H1), full),                  # W1 [in, H1]
                pl.BlockSpec((1, H1), full),                     # b1
                pl.BlockSpec((H1, H2), full),                    # W2 [H1, H2]
                pl.BlockSpec((1, H2), full),                     # b2
                pl.BlockSpec((1, H2), full),                     # W3 row [1, H2]
                pl.BlockSpec((1, 1), full),                      # b3
            ],
            out_specs=pl.BlockSpec((1, tile_m), lambda i: (0, i)),
        ),
        # "parallel" lets v7x shard the batch grid across both TensorCores.
        # Total VMEM footprint is ~1-2 MiB, far below the 32 MiB scoped default,
        # so no vmem_limit_bytes override is needed at these sizes.
        compiler_params=pltpu.CompilerParams(
            dimension_semantics=("parallel",)),
    )(x_in, w1_in, b1, w2_in, b2, w3, b3)

    return out_row.reshape(-1)[:B].reshape(B, 1)


def init_params(key, input_size, hidden_size_1=512, hidden_size_2=256,
                dtype=jnp.float32):
    """Deterministic init mimicking torch.nn.Linear default U(-1/sqrt(fan_in), ...).
    W1/W2 are pre-transposed [in, out]; W3 is stored as a [1, hidden_size_2] row."""
    ks = jax.random.split(key, 6)

    def lin(kw, kb, fan_in, fan_out):
        bound = 1.0 / jnp.sqrt(float(fan_in))
        w = jax.random.uniform(kw, (fan_in, fan_out), dtype, -bound, bound)
        b = jax.random.uniform(kb, (1, fan_out), dtype, -bound, bound)
        return w, b

    w1, b1 = lin(ks[0], ks[1], input_size, hidden_size_1)
    w2, b2 = lin(ks[2], ks[3], hidden_size_1, hidden_size_2)
    bound3 = 1.0 / jnp.sqrt(float(hidden_size_2))
    w3 = jax.random.uniform(ks[4], (1, hidden_size_2), dtype, -bound3, bound3)
    b3 = jax.random.uniform(ks[5], (1, 1), dtype, -bound3, bound3)
    return {"w1": w1, "b1": b1, "w2": w2, "b2": b2, "w3": w3, "b3": b3}


def reference_forward(x, p):
    h1 = jnp.maximum(x @ p["w1"] + p["b1"], 0.0)
    h2 = jnp.maximum(h1 @ p["w2"] + p["b2"], 0.0)
    return h2 @ p["w3"].T + p["b3"]


if __name__ == "__main__":
    key = jax.random.PRNGKey(0)
    k_x, k_p, k_x2 = jax.random.split(key, 3)

    input_size = 32
    params = init_params(k_p, input_size)  # hidden sizes 512, 256 (module defaults)

    # Small-batch demo: single-shot (one grid step, no pipeline overhead).
    batch = 16
    x = jax.random.normal(k_x, (batch, input_size), jnp.float32)
    ref = reference_forward(x, params)

    out_f32 = jax.block_until_ready(three_layer_classifier(x, params))
    assert out_f32.shape == (batch, 1), out_f32.shape
    assert jnp.allclose(out_f32, ref, atol=1e-4, rtol=1e-4), \
        float(jnp.max(jnp.abs(out_f32 - ref)))

    # bf16 MXU-input path (v6e/v7x native); f32 accumulation keeps error small.
    out_bf16 = jax.block_until_ready(
        three_layer_classifier(x, params, mxu_dtype=jnp.bfloat16))
    assert jnp.allclose(out_bf16, ref, atol=5e-2, rtol=5e-2), \
        float(jnp.max(jnp.abs(out_bf16 - ref)))

    # Non-multiple batch with explicit tiling: exercises padding + multi-tile
    # lane-dense output path (tile_m=128 keeps the last dim a multiple of 128).
    x2 = jax.random.normal(k_x2, (300, input_size), jnp.float32)
    ref2 = reference_forward(x2, params)
    out2 = jax.block_until_ready(three_layer_classifier(x2, params, tile_m=128))
    assert out2.shape == (300, 1), out2.shape
    assert jnp.allclose(out2, ref2, atol=1e-4, rtol=1e-4), \
        float(jnp.max(jnp.abs(out2 - ref2)))

    print("KERNEL_OK")
</pallas_src>

<mosaic_0001>
module attributes {stable_mosaic.version = 11 : i64} {
  func.func @mlp3_kernel(%arg0: i32, %arg1: memref<16x32xf32, #tpu.memory_space<vmem>>, %arg2: memref<32x512xf32, #tpu.memory_space<vmem>>, %arg3: memref<1x512xf32, #tpu.memory_space<vmem>>, %arg4: memref<512x256xf32, #tpu.memory_space<vmem>>, %arg5: memref<1x256xf32, #tpu.memory_space<vmem>>, %arg6: memref<1x256xf32, #tpu.memory_space<vmem>>, %arg7: memref<1x1xf32, #tpu.memory_space<vmem>>, %arg8: memref<1x16xf32, #tpu.memory_space<vmem>>) attributes {dimension_semantics = [#tpu.dimension_semantics<parallel>], iteration_bounds = array<i64: 1>, scalar_prefetch = 0 : i64, scratch_operands = 0 : i64, tpu.core_type = #tpu.core_type<tc>, window_params = [{transform_indices = @transform_0, window_bounds = array<i64: 16, 32>}, {pipeline_mode = #tpu.pipeline_mode<synchronous>, transform_indices = @transform_1, window_bounds = array<i64: 32, 512>}, {pipeline_mode = #tpu.pipeline_mode<synchronous>, transform_indices = @transform_2, window_bounds = array<i64: 1, 512>}, {pipeline_mode = #tpu.pipeline_mode<synchronous>, transform_indices = @transform_3, window_bounds = array<i64: 512, 256>}, {pipeline_mode = #tpu.pipeline_mode<synchronous>, transform_indices = @transform_4, window_bounds = array<i64: 1, 256>}, {pipeline_mode = #tpu.pipeline_mode<synchronous>, transform_indices = @transform_5, window_bounds = array<i64: 1, 256>}, {pipeline_mode = #tpu.pipeline_mode<synchronous>, transform_indices = @transform_6, window_bounds = array<i64: 1, 1>}, {transform_indices = @transform_7, window_bounds = array<i64: 1, 16>}]} {
    %c0 = arith.constant 0 : index
    %c0_0 = arith.constant 0 : index
    %0 = vector.load %arg1[%c0, %c0_0] : memref<16x32xf32, #tpu.memory_space<vmem>>, vector<16x32xf32>
    %c0_1 = arith.constant 0 : index
    %c0_2 = arith.constant 0 : index
    %1 = vector.load %arg2[%c0_1, %c0_2] : memref<32x512xf32, #tpu.memory_space<vmem>>, vector<32x512xf32>
    %cst = arith.constant dense<0.000000e+00> : vector<16x512xf32>
    %2 = tpu.matmul %0, %1, %cst {dimension_numbers = #tpu.dot_dimension_numbers<[1], [0], [0], [1], [0, 0, 1, 1], [], []>} : vector<16x32xf32>, vector<32x512xf32>, vector<16x512xf32> -> vector<16x512xf32>
    %c0_3 = arith.constant 0 : index
    %c0_4 = arith.constant 0 : index
    %3 = vector.load %arg3[%c0_3, %c0_4] : memref<1x512xf32, #tpu.memory_space<vmem>>, vector<1x512xf32>
    %4 = vector.broadcast %3 : vector<1x512xf32> to vector<16x512xf32>
    %5 = arith.addf %2, %4 : vector<16x512xf32>
    %cst_5 = arith.constant 0.000000e+00 : f32
    %6 = vector.broadcast %cst_5 : f32 to vector<16x512xf32>
    %7 = arith.maximumf %5, %6 : vector<16x512xf32>
    %c0_6 = arith.constant 0 : index
    %c0_7 = arith.constant 0 : index
    %8 = vector.load %arg4[%c0_6, %c0_7] : memref<512x256xf32, #tpu.memory_space<vmem>>, vector<512x256xf32>
    %cst_8 = arith.constant dense<0.000000e+00> : vector<16x256xf32>
    %9 = tpu.matmul %7, %8, %cst_8 {dimension_numbers = #tpu.dot_dimension_numbers<[1], [0], [0], [1], [0, 0, 1, 1], [], []>} : vector<16x512xf32>, vector<512x256xf32>, vector<16x256xf32> -> vector<16x256xf32>
    %c0_9 = arith.constant 0 : index
    %c0_10 = arith.constant 0 : index
    %10 = vector.load %arg5[%c0_9, %c0_10] : memref<1x256xf32, #tpu.memory_space<vmem>>, vector<1x256xf32>
    %11 = vector.broadcast %10 : vector<1x256xf32> to vector<16x256xf32>
    %12 = arith.addf %9, %11 : vector<16x256xf32>
    %cst_11 = arith.constant 0.000000e+00 : f32
    %13 = vector.broadcast %cst_11 : f32 to vector<16x256xf32>
    %14 = arith.maximumf %12, %13 : vector<16x256xf32>
    %c0_12 = arith.constant 0 : index
    %c0_13 = arith.constant 0 : index
    %15 = vector.load %arg6[%c0_12, %c0_13] : memref<1x256xf32, #tpu.memory_space<vmem>>, vector<1x256xf32>
    %16 = vector.broadcast %15 : vector<1x256xf32> to vector<16x256xf32>
    %17 = arith.mulf %14, %16 : vector<16x256xf32>
    %cst_14 = arith.constant dense<0.000000e+00> : vector<16xf32>
    %18 = vector.multi_reduction <add>, %17, %cst_14 [1] : vector<16x256xf32> to vector<16xf32>
    %19 = vector.shape_cast %18 : vector<16xf32> to vector<1x16xf32>
    %c0_15 = arith.constant 0 : index
    %c0_16 = arith.constant 0 : index
    %20 = vector.load %arg7[%c0_15, %c0_16] : memref<1x1xf32, #tpu.memory_space<vmem>>, vector<1x1xf32>
    %21 = vector.broadcast %20 : vector<1x1xf32> to vector<1x16xf32>
    %22 = arith.addf %19, %21 : vector<1x16xf32>
    %c0_17 = arith.constant 0 : index
    %c0_18 = arith.constant 0 : index
    %23 = vector.load %arg8[%c0_17, %c0_18] : memref<1x16xf32, #tpu.memory_space<vmem>>, vector<1x16xf32>
    tpu.vector_store %arg8[%c0_17, %c0_18], %22 {strides = array<i32>} : memref<1x16xf32, #tpu.memory_space<vmem>>, vector<1x16xf32>,
    return
  }
  func.func @transform_0(%arg0: i32) -> (i32, i32) {
    %c0_i32 = arith.constant 0 : i32
    %c0_i32_0 = arith.constant 0 : i32
    return %arg0, %c0_i32 : i32, i32
  }
  func.func @transform_1(%arg0: i32) -> (i32, i32) {
    %c0_i32 = arith.constant 0 : i32
    %c0_i32_0 = arith.constant 0 : i32
    %c0_i32_1 = arith.constant 0 : i32
    return %c0_i32, %c0_i32_0 : i32, i32
  }
  func.func @transform_2(%arg0: i32) -> (i32, i32) {
    %c0_i32 = arith.constant 0 : i32
    %c0_i32_0 = arith.constant 0 : i32
    %c0_i32_1 = arith.constant 0 : i32
    return %c0_i32, %c0_i32_0 : i32, i32
  }
  func.func @transform_3(%arg0: i32) -> (i32, i32) {
    %c0_i32 = arith.constant 0 : i32
    %c0_i32_0 = arith.constant 0 : i32
    %c0_i32_1 = arith.constant 0 : i32
    return %c0_i32, %c0_i32_0 : i32, i32
  }
  func.func @transform_4(%arg0: i32) -> (i32, i32) {
    %c0_i32 = arith.constant 0 : i32
    %c0_i32_0 = arith.constant 0 : i32
    %c0_i32_1 = arith.constant 0 : i32
    return %c0_i32, %c0_i32_0 : i32, i32
  }
  func.func @transform_5(%arg0: i32) -> (i32, i32) {
    %c0_i32 = arith.constant 0 : i32
    %c0_i32_0 = arith.constant 0 : i32
    %c0_i32_1 = arith.constant 0 : i32
    return %c0_i32, %c0_i32_0 : i32, i32
  }
  func.func @transform_6(%arg0: i32) -> (i32, i32) {
    %c0_i32 = arith.constant 0 : i32
    %c0_i32_0 = arith.constant 0 : i32
    %c0_i32_1 = arith.constant 0 : i32
    return %c0_i32, %c0_i32_0 : i32, i32
  }
  func.func @transform_7(%arg0: i32) -> (i32, i32) {
    %c0_i32 = arith.constant 0 : i32
    %c0_i32_0 = arith.constant 0 : i32
    return %c0_i32, %arg0 : i32, i32
  }
}

</mosaic_0001>

<llo_original>
// kernel: tpu_custom_call.1
$region0: #{tpu_custom_call.1}
  #allocation0 [shape = 'u32[]', space=smem, size = 0x4, offset = 0x4, fixed_abs, tag = 'smem constant byte address 0x4 - core index']
  #allocation1 [shape = 'u32[72,128]{1,0:T(1,128)}', space=vmem, size = 0x9000, scoped, tag = 'internal scratch']
  #allocation2 [shape = 'f32[1,1]{1,0:T(1,128)S(1)}', space=vmem, size = 0x200, scoped, tag = 'scoped memory for tpu_custom_call.1']
  %s0 = inlined_call_operand.hbm [shape: f32[16,32], index: 0, kind: input, shape index: {}]
  %s1 = inlined_call_operand.hbm [shape: f32[32,512], index: 1, kind: input, shape index: {}]
  %s2 = inlined_call_operand.hbm [shape: f32[1,512], index: 2, kind: input, shape index: {}]
  %s3 = inlined_call_operand.hbm [shape: f32[512,256], index: 3, kind: input, shape index: {}]
  %s4 = inlined_call_operand.vmem [shape: f32[1,256], index: 4, kind: input, shape index: {}]
  %s5 = inlined_call_operand.vmem [shape: f32[1,256], index: 5, kind: input, shape index: {}]
  %s6 = inlined_call_operand.<no memory space> [shape: f32[1,1], index: 6, kind: input, shape index: {}]
  %s7 = inlined_call_operand.hbm [shape: f32[1,16], index: 7, kind: output, shape index: {}]
  %s8 = sld [smem:[#allocation0]]
  $region54: #{tpu_custom_call.1} parent=0
    _
  %s10 = ssub.s32 1, %s8
  %s11 = scalar_select 0, %s10, %s8
  %v12 = vstv %s6
  %13 = vst [vmem:[#allocation2] sm:$0x1] %v12
  $region1: #{tpu_custom_call.1} parent=0
    #allocation3 [shape = 'u8[8192]{0}', space=vmem, size = 0x2000, scoped, tag = 'input window, operand 0, single buffered']
    #allocation4 [shape = 's32[1]{0}', space=sflag, size = 0x4, scoped, tag = 'scoped memory for tpu_custom_call.1']
    #allocation5 [shape = 's32[1]{0}', space=sflag, size = 0x4, scoped, tag = 'scoped memory for tpu_custom_call.1']
    #allocation6 [shape = 'u8[65536]{0}', space=vmem, size = 0x10000, scoped, tag = 'input window, operand 1, single buffered']
    #allocation7 [shape = 's32[1]{0}', space=sflag, size = 0x4, scoped, tag = 'scoped memory for tpu_custom_call.1']
    #allocation8 [shape = 'u8[2048]{0}', space=vmem, size = 0x800, scoped, tag = 'input window, operand 2, single buffered']
    #allocation9 [shape = 'u8[524288]{0}', space=vmem, size = 0x80000, scoped, tag = 'input window, operand 3, single buffered']
    #allocation10 [shape = 's32[1]{0}', space=sflag, size = 0x4, scoped, tag = 'scoped memory for tpu_custom_call.1']
    #allocation11 [shape = 'u8[512]{0}', space=vmem, size = 0x400, scoped, tag = 'output window, operand 0, single buffered']
    %14 = vsyncpa [#allocation4], 0
    %15 = vsyncpa [#allocation7], 0
    %16 = vsyncpa [#allocation10], 0
    %17 = vsyncpa [#allocation5], 0
    // Predicated region
    $region2: #{tpu_custom_call.1} parent=1 // pred_check
      _
    $region3: #{tpu_custom_call.1} parent=1 // pred_check_branch
      %19 = sbr.rel (0) target = $region5
    $region4: #{tpu_custom_call.1} parent=1 // pred_region
      %21 = vsyncadd [#allocation4], 0
      %s22 = sshll.u32 %s0, 4
      %s23 = int_to_ptr.hbm [resolvable:$true] %s22
      %s24 = sshll.u32 [#allocation3], 4
      %s25 = int_to_ptr.vmem [resolvable:$true] %s24
      %30 = dma.hbm_to_vmem [thread:$0]  %s23, 256, %s25, [#allocation4], 128, 128, 8
    $region5: #{tpu_custom_call.1} parent=1 // pred_fallthru
      _
    // Predicated region
    $region6: #{tpu_custom_call.1} parent=1 // pred_check
      _
    $region7: #{tpu_custom_call.1} parent=1 // pred_check_branch
      %32 = sbr.rel (0) target = $region9
    $region8: #{tpu_custom_call.1} parent=1 // pred_region
      %34 = vsyncadd [#allocation7], 0
      %s35 = sshll.u32 %s1, 4
      %s36 = int_to_ptr.hbm [resolvable:$true] %s35
      %s37 = sshll.u32 [#allocation6], 4
      %s38 = int_to_ptr.vmem [resolvable:$true] %s37
      %43 = dma.hbm_to_vmem [thread:$0]  %s36, 2048, %s38, [#allocation7], 512, 512, 32
    $region9: #{tpu_custom_call.1} parent=1 // pred_fallthru
      _
    // Predicated region
    $region10: #{tpu_custom_call.1} parent=1 // pred_check
      _
    $region11: #{tpu_custom_call.1} parent=1 // pred_check_branch
      %45 = sbr.rel (0) target = $region13
    $region12: #{tpu_custom_call.1} parent=1 // pred_region
      %47 = vsyncadd [#allocation7], 0
      %s49 = sshll.u32 %s2, 4
      %s50 = int_to_ptr.hbm [resolvable:$true] %s49
      %s51 = sshll.u32 [#allocation8], 4
      %s52 = int_to_ptr.vmem [resolvable:$true] %s51
      %54 = dma.hbm_to_vmem [thread:$0]  %s50, 64, %s52, [#allocation7]
    $region13: #{tpu_custom_call.1} parent=1 // pred_fallthru
      _
    // Predicated region
    $region14: #{tpu_custom_call.1} parent=1 // pred_check
      _
    $region15: #{tpu_custom_call.1} parent=1 // pred_check_branch
      %56 = sbr.rel (0) target = $region17
    $region16: #{tpu_custom_call.1} parent=1 // pred_region
      %58 = vsyncadd [#allocation10], 0
      %s59 = sshll.u32 %s3, 4
      %s60 = int_to_ptr.hbm [resolvable:$true] %s59
      %s61 = sshll.u32 [#allocation9], 4
      %s62 = int_to_ptr.vmem [resolvable:$true] %s61
      %67 = dma.hbm_to_vmem [thread:$0]  %s60, 16384, %s62, [#allocation10], 256, 256, 16
    $region17: #{tpu_custom_call.1} parent=1 // pred_fallthru
      _
    // Predicated region
    $region18: #{tpu_custom_call.1} parent=1 // pred_check
      _
    $region19: #{tpu_custom_call.1} parent=1 // pred_check_branch
      %69 = sbr.rel (0) target = $region21
    $region20: #{tpu_custom_call.1} parent=1 // pred_region
      _
    $region21: #{tpu_custom_call.1} parent=1 // pred_fallthru
      _
    // Predicated region
    $region22: #{tpu_custom_call.1} parent=1 // pred_check
      _
    $region23: #{tpu_custom_call.1} parent=1 // pred_check_branch
      %71 = sbr.rel (0) target = $region25
    $region24: #{tpu_custom_call.1} parent=1 // pred_region
      _
    $region25: #{tpu_custom_call.1} parent=1 // pred_fallthru
      _
    // Predicated region
    $region26: #{tpu_custom_call.1} parent=1 // pred_check
      _
    $region27: #{tpu_custom_call.1} parent=1 // pred_check_branch
      %73 = sbr.rel (0) target = $region29
    $region28: #{tpu_custom_call.1} parent=1 // pred_region
      _
    $region29: #{tpu_custom_call.1} parent=1 // pred_fallthru
      _
    // Predicated region
    $region30: #{tpu_custom_call.1} parent=1 // pred_check
      _
    $region31: #{tpu_custom_call.1} parent=1 // pred_check_branch
      %75 = sbr.rel (0) target = $region33
    $region32: #{tpu_custom_call.1} parent=1 // pred_region
      %77 = dma.done [#allocation4], 256
    $region33: #{tpu_custom_call.1} parent=1 // pred_fallthru
      _
    // Predicated region
    $region34: #{tpu_custom_call.1} parent=1 // pred_check
      _
    $region35: #{tpu_custom_call.1} parent=1 // pred_check_branch
      %79 = sbr.rel (0) target = $region37
    $region36: #{tpu_custom_call.1} parent=1 // pred_region
      %81 = dma.done [#allocation7], 2048
    $region37: #{tpu_custom_call.1} parent=1 // pred_fallthru
      _
    // Predicated region
    $region38: #{tpu_custom_call.1} parent=1 // pred_check
      _
    $region39: #{tpu_custom_call.1} parent=1 // pred_check_branch
      %83 = sbr.rel (0) target = $region41
    $region40: #{tpu_custom_call.1} parent=1 // pred_region
      %85 = dma.done [#allocation7], 64
    $region41: #{tpu_custom_call.1} parent=1 // pred_fallthru
      _
    // Predicated region
    $region42: #{tpu_custom_call.1} parent=1 // pred_check
      _
    $region43: #{tpu_custom_call.1} parent=1 // pred_check_branch
      %87 = sbr.rel (0) target = $region45
    $region44: #{tpu_custom_call.1} parent=1 // pred_region
      %89 = dma.done [#allocation10], 16384
    $region45: #{tpu_custom_call.1} parent=1 // pred_fallthru
      _
    %v90 = vld [vmem:[#allocation3] sm:$0xff]
    %v91 = vld [vmem:[#allocation3 + $0x8] sm:$0xff]
    %v92 = vld [vmem:[#allocation6] sm:$0xff]
    %v93 = vld [vmem:[#allocation6 + $0x8] sm:$0xff]
    %v94 = vld [vmem:[#allocation6 + $0x10] sm:$0xff]
    %v95 = vld [vmem:[#allocation6 + $0x18] sm:$0xff]
    %v96 = vld [vmem:[#allocation6 + $0x20] sm:$0xff]
    %v97 = vld [vmem:[#allocation6 + $0x28] sm:$0xff]
    %v98 = vld [vmem:[#allocation6 + $0x30] sm:$0xff]
    %v99 = vld [vmem:[#allocation6 + $0x38] sm:$0xff]
    %v100 = vld [vmem:[#allocation6 + $0x40] sm:$0xff]
    %v101 = vld [vmem:[#allocation6 + $0x48] sm:$0xff]
    %v102 = vld [vmem:[#allocation6 + $0x50] sm:$0xff]
    %v103 = vld [vmem:[#allocation6 + $0x58] sm:$0xff]
    %v104 = vld [vmem:[#allocation6 + $0x60] sm:$0xff]
    %v105 = vld [vmem:[#allocation6 + $0x68] sm:$0xff]
    %v106 = vld [vmem:[#allocation6 + $0x70] sm:$0xff]
    %v107 = vld [vmem:[#allocation6 + $0x78] sm:$0xff]
    %v108 = vld [vmem:[#allocation8] sm:$0xf]
    %v110 = vperm.slane %v108, 0
    %v111 = vperm.slane %v108, 1
    %v112 = vperm.slane %v108, 2
    %v113 = vperm.slane %v108, 3
    %vm118 = vcmask 261120
    %v120 = vsel %vm118, %v90, 0
    %v123 = vsel %vm118, %v91, 0
    %125 = vmatpush.msra.mxu0 0.0
    %126 = vmatpush.msra.mxu0 0.0
    %127 = vmatpush.msra.mxu0 0.0
    %128 = vmatpush.msra.mxu0 0.0
    %129 = vmatpush.msra.mxu0 0.0
    %130 = vmatpush.msra.mxu0 0.0
    %131 = vmatpush.msra.mxu0 0.0
    %132 = vmatpush.msra.mxu0 0.0
    %133 = vmatpush.msra.mxu0 0.0
    %134 = vmatpush.msra.mxu0 0.0
    %135 = vmatpush.msra.mxu0 0.0
    %136 = vmatpush.msra.mxu0 0.0
    %137 = vmatpush.msra.mxu0 %v104
    %138 = vmatpush.msra.mxu0 %v100
    %139 = vmatpush.msra.mxu0 %v96
    %140 = vmatpush.msra.mxu0 %v92
    %141 = vmatmul.f32.gmra.mxu0 %v120
    %v142 = vpop.f32.mrf.mxu0
    %v143 = vadd.f32 %v110, %v142
    %144 = vmatmul.f32.gmra.mxu0 %v123
    %v145 = vpop.f32.mrf.mxu0
    %v146 = vadd.f32 %v110, %v145
    %147 = vdwg.mxu0
    %148 = vmatpush.msra.mxu0 0.0
    %149 = vmatpush.msra.mxu0 0.0
    %150 = vmatpush.msra.mxu0 0.0
    %151 = vmatpush.msra.mxu0 0.0
    %152 = vmatpush.msra.mxu0 0.0
    %153 = vmatpush.msra.mxu0 0.0
    %154 = vmatpush.msra.mxu0 0.0
    %155 = vmatpush.msra.mxu0 0.0
    %156 = vmatpush.msra.mxu0 0.0
    %157 = vmatpush.msra.mxu0 0.0
    %158 = vmatpush.msra.mxu0 0.0
    %159 = vmatpush.msra.mxu0 0.0
    %160 = vmatpush.msra.mxu0 %v105
    %161 = vmatpush.msra.mxu0 %v101
    %162 = vmatpush.msra.mxu0 %v97
    %163 = vmatpush.msra.mxu0 %v93
    %164 = vmatmul.f32.gmra.mxu0 %v120
    %v165 = vpop.f32.mrf.mxu0
    %v166 = vadd.f32 %v111, %v165
    %167 = vmatmul.f32.gmra.mxu0 %v123
    %v168 = vpop.f32.mrf.mxu0
    %v169 = vadd.f32 %v111, %v168
    %170 = vdwg.mxu0
    %171 = vmatpush.msra.mxu0 0.0
    %172 = vmatpush.msra.mxu0 0.0
    %173 = vmatpush.msra.mxu0 0.0
    %174 = vmatpush.msra.mxu0 0.0
    %175 = vmatpush.msra.mxu0 0.0
    %176 = vmatpush.msra.mxu0 0.0
    %177 = vmatpush.msra.mxu0 0.0
    %178 = vmatpush.msra.mxu0 0.0
    %179 = vmatpush.msra.mxu0 0.0
    %180 = vmatpush.msra.mxu0 0.0
    %181 = vmatpush.msra.mxu0 0.0
    %182 = vmatpush.msra.mxu0 0.0
    %183 = vmatpush.msra.mxu0 %v106
    %184 = vmatpush.msra.mxu0 %v102
    %185 = vmatpush.msra.mxu0 %v98
    %186 = vmatpush.msra.mxu0 %v94
    %187 = vmatmul.f32.gmra.mxu0 %v120
    %v188 = vpop.f32.mrf.mxu0
    %v189 = vadd.f32 %v112, %v188
    %190 = vmatmul.f32.gmra.mxu0 %v123
    %v191 = vpop.f32.mrf.mxu0
    %v192 = vadd.f32 %v112, %v191
    %193 = vdwg.mxu0
    %194 = vmatpush.msra.mxu0 0.0
    %195 = vmatpush.msra.mxu0 0.0
    %196 = vmatpush.msra.mxu0 0.0
    %197 = vmatpush.msra.mxu0 0.0
    %198 = vmatpush.msra.mxu0 0.0
    %199 = vmatpush.msra.mxu0 0.0
    %200 = vmatpush.msra.mxu0 0.0
    %201 = vmatpush.msra.mxu0 0.0
    %202 = vmatpush.msra.mxu0 0.0
    %203 = vmatpush.msra.mxu0 0.0
    %204 = vmatpush.msra.mxu0 0.0
    %205 = vmatpush.msra.mxu0 0.0
    %206 = vmatpush.msra.mxu0 %v107
    %207 = vmatpush.msra.mxu0 %v103
    %208 = vmatpush.msra.mxu0 %v99
    %209 = vmatpush.msra.mxu0 %v95
    %210 = vmatmul.f32.gmra.mxu0 %v120
    %v211 = vpop.f32.mrf.mxu0
    %v212 = vadd.f32 %v113, %v211
    %213 = vmatmul.f32.gmra.mxu0 %v123
    %v214 = vpop.f32.mrf.mxu0
    %v215 = vadd.f32 %v113, %v214
    %216 = vdwg.mxu0
    %v217 = vmax.f32 %v143, 0.0
    %v218 = vmax.f32 %v166, 0.0
    %v219 = vmax.f32 %v189, 0.0
    %v220 = vmax.f32 %v212, 0.0
    %v221 = vmax.f32 %v146, 0.0
    %v222 = vmax.f32 %v169, 0.0
    %v223 = vmax.f32 %v192, 0.0
    %v224 = vmax.f32 %v215, 0.0
    %v225 = vld [vmem:[#allocation9] sm:$0xff]
    %v226 = vld [vmem:[#allocation9 + $0x8] sm:$0xff]
    %v227 = vld [vmem:[#allocation9 + $0x10] sm:$0xff]
    %v228 = vld [vmem:[#allocation9 + $0x18] sm:$0xff]
    %v229 = vld [vmem:[#allocation9 + $0x20] sm:$0xff]
    %v230 = vld [vmem:[#allocation9 + $0x28] sm:$0xff]
    %v231 = vld [vmem:[#allocation9 + $0x30] sm:$0xff]
    %v232 = vld [vmem:[#allocation9 + $0x38] sm:$0xff]
    %v233 = vld [vmem:[#allocation9 + $0x40] sm:$0xff]
    %v234 = vld [vmem:[#allocation9 + $0x48] sm:$0xff]
    %v235 = vld [vmem:[#allocation9 + $0x50] sm:$0xff]
    %v236 = vld [vmem:[#allocation9 + $0x58] sm:$0xff]
    %v237 = vld [vmem:[#allocation9 + $0x60] sm:$0xff]
    %v238 = vld [vmem:[#allocation9 + $0x68] sm:$0xff]
    %v239 = vld [vmem:[#allocation9 + $0x70] sm:$0xff]
    %v240 = vld [vmem:[#allocation9 + $0x78] sm:$0xff]
    %v241 = vld [vmem:[#allocation9 + $0x80] sm:$0xff]
    %v242 = vld [vmem:[#allocation9 + $0x88] sm:$0xff]
    %v243 = vld [vmem:[#allocation9 + $0x90] sm:$0xff]
    %v244 = vld [vmem:[#allocation9 + $0x98] sm:$0xff]
    %v245 = vld [vmem:[#allocation9 + $0xa0] sm:$0xff]
    %v246 = vld [vmem:[#allocation9 + $0xa8] sm:$0xff]
    %v247 = vld [vmem:[#allocation9 + $0xb0] sm:$0xff]
    %v248 = vld [vmem:[#allocation9 + $0xb8] sm:$0xff]
    %v249 = vld [vmem:[#allocation9 + $0xc0] sm:$0xff]
    %v250 = vld [vmem:[#allocation9 + $0xc8] sm:$0xff]
    %v251 = vld [vmem:[#allocation9 + $0xd0] sm:$0xff]
    %v252 = vld [vmem:[#allocation9 + $0xd8] sm:$0xff]
    %v253 = vld [vmem:[#allocation9 + $0xe0] sm:$0xff]
    %v254 = vld [vmem:[#allocation9 + $0xe8] sm:$0xff]
    %v255 = vld [vmem:[#allocation9 + $0xf0] sm:$0xff]
    %v256 = vld [vmem:[#allocation9 + $0xf8] sm:$0xff]
    %v257 = vld [vmem:[#allocation9 + $0x100] sm:$0xff]
    %v258 = vld [vmem:[#allocation9 + $0x108] sm:$0xff]
    %v259 = vld [vmem:[#allocation9 + $0x110] sm:$0xff]
    %v260 = vld [vmem:[#allocation9 + $0x118] sm:$0xff]
    %v261 = vld [vmem:[#allocation9 + $0x120] sm:$0xff]
    %v262 = vld [vmem:[#allocation9 + $0x128] sm:$0xff]
    %v263 = vld [vmem:[#allocation9 + $0x130] sm:$0xff]
    %v264 = vld [vmem:[#allocation9 + $0x138] sm:$0xff]
    %v265 = vld [vmem:[#allocation9 + $0x140] sm:$0xff]
    %v266 = vld [vmem:[#allocation9 + $0x148] sm:$0xff]
    %v267 = vld [vmem:[#allocation9 + $0x150] sm:$0xff]
    %v268 = vld [vmem:[#allocation9 + $0x158] sm:$0xff]
    %v269 = vld [vmem:[#allocation9 + $0x160] sm:$0xff]
    %v270 = vld [vmem:[#allocation9 + $0x168] sm:$0xff]
    %v271 = vld [vmem:[#allocation9 + $0x170] sm:$0xff]
    %v272 = vld [vmem:[#allocation9 + $0x178] sm:$0xff]
    %v273 = vld [vmem:[#allocation9 + $0x180] sm:$0xff]
    %v274 = vld [vmem:[#allocation9 + $0x188] sm:$0xff]
    %v275 = vld [vmem:[#allocation9 + $0x190] sm:$0xff]
    %v276 = vld [vmem:[#allocation9 + $0x198] sm:$0xff]
    %v277 = vld [vmem:[#allocation9 + $0x1a0] sm:$0xff]
    %v278 = vld [vmem:[#allocation9 + $0x1a8] sm:$0xff]
    %v279 = vld [vmem:[#allocation9 + $0x1b0] sm:$0xff]
    %v280 = vld [vmem:[#allocation9 + $0x1b8] sm:$0xff]
    %v281 = vld [vmem:[#allocation9 + $0x1c0] sm:$0xff]
    %v282 = vld [vmem:[#allocation9 + $0x1c8] sm:$0xff]
    %v283 = vld [vmem:[#allocation9 + $0x1d0] sm:$0xff]
    %v284 = vld [vmem:[#allocation9 + $0x1d8] sm:$0xff]
    %v285 = vld [vmem:[#allocation9 + $0x1e0] sm:$0xff]
    %v286 = vld [vmem:[#allocation9 + $0x1e8] sm:$0xff]
    %v287 = vld [vmem:[#allocation9 + $0x1f0] sm:$0xff]
    %v288 = vld [vmem:[#allocation9 + $0x1f8] sm:$0xff]
    %v289 = vld [vmem:[#allocation9 + $0x200] sm:$0xff]
    %v290 = vld [vmem:[#allocation9 + $0x208] sm:$0xff]
    %v291 = vld [vmem:[#allocation9 + $0x210] sm:$0xff]
    %v292 = vld [vmem:[#allocation9 + $0x218] sm:$0xff]
    %v293 = vld [vmem:[#allocation9 + $0x220] sm:$0xff]
    %v294 = vld [vmem:[#allocation9 + $0x228] sm:$0xff]
    %v295 = vld [vmem:[#allocation9 + $0x230] sm:$0xff]
    %v296 = vld [vmem:[#allocation9 + $0x238] sm:$0xff]
    %v297 = vld [vmem:[#allocation9 + $0x240] sm:$0xff]
    %v298 = vld [vmem:[#allocation9 + $0x248] sm:$0xff]
    %v299 = vld [vmem:[#allocation9 + $0x250] sm:$0xff]
    %v300 = vld [vmem:[#allocation9 + $0x258] sm:$0xff]
    %v301 = vld [vmem:[#allocation9 + $0x260] sm:$0xff]
    %v302 = vld [vmem:[#allocation9 + $0x268] sm:$0xff]
    %v303 = vld [vmem:[#allocation9 + $0x270] sm:$0xff]
    %v304 = vld [vmem:[#allocation9 + $0x278] sm:$0xff]
    %v305 = vld [vmem:[#allocation9 + $0x280] sm:$0xff]
    %v306 = vld [vmem:[#allocation9 + $0x288] sm:$0xff]
    %v307 = vld [vmem:[#allocation9 + $0x290] sm:$0xff]
    %v308 = vld [vmem:[#allocation9 + $0x298] sm:$0xff]
    %v309 = vld [vmem:[#allocation9 + $0x2a0] sm:$0xff]
    %v310 = vld [vmem:[#allocation9 + $0x2a8] sm:$0xff]
    %v311 = vld [vmem:[#allocation9 + $0x2b0] sm:$0xff]
    %v312 = vld [vmem:[#allocation9 + $0x2b8] sm:$0xff]
    %v313 = vld [vmem:[#allocation9 + $0x2c0] sm:$0xff]
    %v314 = vld [vmem:[#allocation9 + $0x2c8] sm:$0xff]
    %v315 = vld [vmem:[#allocation9 + $0x2d0] sm:$0xff]
    %v316 = vld [vmem:[#allocation9 + $0x2d8] sm:$0xff]
    %v317 = vld [vmem:[#allocation9 + $0x2e0] sm:$0xff]
    %v318 = vld [vmem:[#allocation9 + $0x2e8] sm:$0xff]
    %v319 = vld [vmem:[#allocation9 + $0x2f0] sm:$0xff]
    %v320 = vld [vmem:[#allocation9 + $0x2f8] sm:$0xff]
    %v321 = vld [vmem:[#allocation9 + $0x300] sm:$0xff]
    %v322 = vld [vmem:[#allocation9 + $0x308] sm:$0xff]
    %v323 = vld [vmem:[#allocation9 + $0x310] sm:$0xff]
    %v324 = vld [vmem:[#allocation9 + $0x318] sm:$0xff]
    %v325 = vld [vmem:[#allocation9 + $0x320] sm:$0xff]
    %v326 = vld [vmem:[#allocation9 + $0x328] sm:$0xff]
    %v327 = vld [vmem:[#allocation9 + $0x330] sm:$0xff]
    %v328 = vld [vmem:[#allocation9 + $0x338] sm:$0xff]
    %v329 = vld [vmem:[#allocation9 + $0x340] sm:$0xff]
    %v330 = vld [vmem:[#allocation9 + $0x348] sm:$0xff]
    %v331 = vld [vmem:[#allocation9 + $0x350] sm:$0xff]
    %v332 = vld [vmem:[#allocation9 + $0x358] sm:$0xff]
    %v333 = vld [vmem:[#allocation9 + $0x360] sm:$0xff]
    %v334 = vld [vmem:[#allocation9 + $0x368] sm:$0xff]
    %v335 = vld [vmem:[#allocation9 + $0x370] sm:$0xff]
    %v336 = vld [vmem:[#allocation9 + $0x378] sm:$0xff]
    %v337 = vld [vmem:[#allocation9 + $0x380] sm:$0xff]
    %v338 = vld [vmem:[#allocation9 + $0x388] sm:$0xff]
    %v339 = vld [vmem:[#allocation9 + $0x390] sm:$0xff]
    %v340 = vld [vmem:[#allocation9 + $0x398] sm:$0xff]
    %v341 = vld [vmem:[#allocation9 + $0x3a0] sm:$0xff]
    %v342 = vld [vmem:[#allocation9 + $0x3a8] sm:$0xff]
    %v343 = vld [vmem:[#allocation9 + $0x3b0] sm:$0xff]
    %v344 = vld [vmem:[#allocation9 + $0x3b8] sm:$0xff]
    %v345 = vld [vmem:[#allocation9 + $0x3c0] sm:$0xff]
    %v346 = vld [vmem:[#allocation9 + $0x3c8] sm:$0xff]
    %v347 = vld [vmem:[#allocation9 + $0x3d0] sm:$0xff]
    %v348 = vld [vmem:[#allocation9 + $0x3d8] sm:$0xff]
    %v349 = vld [vmem:[#allocation9 + $0x3e0] sm:$0xff]
    %v350 = vld [vmem:[#allocation9 + $0x3e8] sm:$0xff]
    %v351 = vld [vmem:[#allocation9 + $0x3f0] sm:$0xff]
    %v352 = vld [vmem:[#allocation9 + $0x3f8] sm:$0xff]
    %v353 = vld [vmem:[%s4] sm:$0x3]
    %v355 = vperm.slane %v353, 0
    %v356 = vperm.slane %v353, 1
    %359 = vmatpush.msra.mxu0 %v255
    %360 = vmatpush.msra.mxu0 %v253
    %361 = vmatpush.msra.mxu0 %v251
    %362 = vmatpush.msra.mxu0 %v249
    %363 = vmatpush.msra.mxu0 %v247
    %364 = vmatpush.msra.mxu0 %v245
    %365 = vmatpush.msra.mxu0 %v243
    %366 = vmatpush.msra.mxu0 %v241
    %367 = vmatpush.msra.mxu0 %v239
    %368 = vmatpush.msra.mxu0 %v237
    %369 = vmatpush.msra.mxu0 %v235
    %370 = vmatpush.msra.mxu0 %v233
    %371 = vmatpush.msra.mxu0 %v231
    %372 = vmatpush.msra.mxu0 %v229
    %373 = vmatpush.msra.mxu0 %v227
    %374 = vmatpush.msra.mxu0 %v225
    %375 = vmatmul.f32.gmra.mxu0 %v217
    %v376 = vpop.f32.mrf.mxu0
    %v377 = vadd.f32 %v355, %v376
    %378 = vmatmul.f32.gmra.mxu0 %v221
    %v379 = vpop.f32.mrf.mxu0
    %v380 = vadd.f32 %v355, %v379
    %381 = vdwg.mxu0
    %382 = vmatpush.msra.mxu0 %v287
    %383 = vmatpush.msra.mxu0 %v285
    %384 = vmatpush.msra.mxu0 %v283
    %385 = vmatpush.msra.mxu0 %v281
    %386 = vmatpush.msra.mxu0 %v279
    %387 = vmatpush.msra.mxu0 %v277
    %388 = vmatpush.msra.mxu0 %v275
    %389 = vmatpush.msra.mxu0 %v273
    %390 = vmatpush.msra.mxu0 %v271
    %391 = vmatpush.msra.mxu0 %v269
    %392 = vmatpush.msra.mxu0 %v267
    %393 = vmatpush.msra.mxu0 %v265
    %394 = vmatpush.msra.mxu0 %v263
    %395 = vmatpush.msra.mxu0 %v261
    %396 = vmatpush.msra.mxu0 %v259
    %397 = vmatpush.msra.mxu0 %v257
    %398 = vmatmul.f32.gmra.mxu0 %v218
    %v399 = vpop.f32.mrf.mxu0
    %v400 = vadd.f32 %v377, %v399
    %401 = vmatmul.f32.gmra.mxu0 %v222
    %v402 = vpop.f32.mrf.mxu0
    %v403 = vadd.f32 %v380, %v402
    %404 = vdwg.mxu0
    %405 = vmatpush.msra.mxu0 %v319
    %406 = vmatpush.msra.mxu0 %v317
    %407 = vmatpush.msra.mxu0 %v315
    %408 = vmatpush.msra.mxu0 %v313
    %409 = vmatpush.msra.mxu0 %v311
    %410 = vmatpush.msra.mxu0 %v309
    %411 = vmatpush.msra.mxu0 %v307
    %412 = vmatpush.msra.mxu0 %v305
    %413 = vmatpush.msra.mxu0 %v303
    %414 = vmatpush.msra.mxu0 %v301
    %415 = vmatpush.msra.mxu0 %v299
    %416 = vmatpush.msra.mxu0 %v297
    %417 = vmatpush.msra.mxu0 %v295
    %418 = vmatpush.msra.mxu0 %v293
    %419 = vmatpush.msra.mxu0 %v291
    %420 = vmatpush.msra.mxu0 %v289
    %421 = vmatmul.f32.gmra.mxu0 %v219
    %v422 = vpop.f32.mrf.mxu0
    %v423 = vadd.f32 %v400, %v422
    %424 = vmatmul.f32.gmra.mxu0 %v223
    %v425 = vpop.f32.mrf.mxu0
    %v426 = vadd.f32 %v403, %v425
    %427 = vdwg.mxu0
    %428 = vmatpush.msra.mxu0 %v351
    %429 = vmatpush.msra.mxu0 %v349
    %430 = vmatpush.msra.mxu0 %v347
    %431 = vmatpush.msra.mxu0 %v345
    %432 = vmatpush.msra.mxu0 %v343
    %433 = vmatpush.msra.mxu0 %v341
    %434 = vmatpush.msra.mxu0 %v339
    %435 = vmatpush.msra.mxu0 %v337
    %436 = vmatpush.msra.mxu0 %v335
    %437 = vmatpush.msra.mxu0 %v333
    %438 = vmatpush.msra.mxu0 %v331
    %439 = vmatpush.msra.mxu0 %v329
    %440 = vmatpush.msra.mxu0 %v327
    %441 = vmatpush.msra.mxu0 %v325
    %442 = vmatpush.msra.mxu0 %v323
    %443 = vmatpush.msra.mxu0 %v321
    %444 = vmatmul.f32.gmra.mxu0 %v220
    %v445 = vpop.f32.mrf.mxu0
    %v446 = vadd.f32 %v423, %v445
    %447 = vmatmul.f32.gmra.mxu0 %v224
    %v448 = vpop.f32.mrf.mxu0
    %v449 = vadd.f32 %v426, %v448
    %450 = vdwg.mxu0
    %451 = vmatpush.msra.mxu0 %v256
    %452 = vmatpush.msra.mxu0 %v254
    %453 = vmatpush.msra.mxu0 %v252
    %454 = vmatpush.msra.mxu0 %v250
    %455 = vmatpush.msra.mxu0 %v248
    %456 = vmatpush.msra.mxu0 %v246
    %457 = vmatpush.msra.mxu0 %v244
    %458 = vmatpush.msra.mxu0 %v242
    %459 = vmatpush.msra.mxu0 %v240
    %460 = vmatpush.msra.mxu0 %v238
    %461 = vmatpush.msra.mxu0 %v236
    %462 = vmatpush.msra.mxu0 %v234
    %463 = vmatpush.msra.mxu0 %v232
    %464 = vmatpush.msra.mxu0 %v230
    %465 = vmatpush.msra.mxu0 %v228
    %466 = vmatpush.msra.mxu0 %v226
    %467 = vmatmul.f32.gmra.mxu0 %v217
    %v468 = vpop.f32.mrf.mxu0
    %v469 = vadd.f32 %v356, %v468
    %470 = vmatmul.f32.gmra.mxu0 %v221
    %v471 = vpop.f32.mrf.mxu0
    %v472 = vadd.f32 %v356, %v471
    %473 = vdwg.mxu0
    %474 = vmatpush.msra.mxu0 %v288
    %475 = vmatpush.msra.mxu0 %v286
    %476 = vmatpush.msra.mxu0 %v284
    %477 = vmatpush.msra.mxu0 %v282
    %478 = vmatpush.msra.mxu0 %v280
    %479 = vmatpush.msra.mxu0 %v278
    %480 = vmatpush.msra.mxu0 %v276
    %481 = vmatpush.msra.mxu0 %v274
    %482 = vmatpush.msra.mxu0 %v272
    %483 = vmatpush.msra.mxu0 %v270
    %484 = vmatpush.msra.mxu0 %v268
    %485 = vmatpush.msra.mxu0 %v266
    %486 = vmatpush.msra.mxu0 %v264
    %487 = vmatpush.msra.mxu0 %v262
    %488 = vmatpush.msra.mxu0 %v260
    %489 = vmatpush.msra.mxu0 %v258
    %490 = vmatmul.f32.gmra.mxu0 %v218
    %v491 = vpop.f32.mrf.mxu0
    %v492 = vadd.f32 %v469, %v491
    %493 = vmatmul.f32.gmra.mxu0 %v222
    %v494 = vpop.f32.mrf.mxu0
    %v495 = vadd.f32 %v472, %v494
    %496 = vdwg.mxu0
    %497 = vmatpush.msra.mxu0 %v320
    %498 = vmatpush.msra.mxu0 %v318
    %499 = vmatpush.msra.mxu0 %v316
    %500 = vmatpush.msra.mxu0 %v314
    %501 = vmatpush.msra.mxu0 %v312
    %502 = vmatpush.msra.mxu0 %v310
    %503 = vmatpush.msra.mxu0 %v308
    %504 = vmatpush.msra.mxu0 %v306
    %505 = vmatpush.msra.mxu0 %v304
    %506 = vmatpush.msra.mxu0 %v302
    %507 = vmatpush.msra.mxu0 %v300
    %508 = vmatpush.msra.mxu0 %v298
    %509 = vmatpush.msra.mxu0 %v296
    %510 = vmatpush.msra.mxu0 %v294
    %511 = vmatpush.msra.mxu0 %v292
    %512 = vmatpush.msra.mxu0 %v290
    %513 = vmatmul.f32.gmra.mxu0 %v219
    %v514 = vpop.f32.mrf.mxu0
    %v515 = vadd.f32 %v492, %v514
    %516 = vmatmul.f32.gmra.mxu0 %v223
    %v517 = vpop.f32.mrf.mxu0
    %v518 = vadd.f32 %v495, %v517
    %519 = vdwg.mxu0
    %520 = vmatpush.msra.mxu0 %v352
    %521 = vmatpush.msra.mxu0 %v350
    %522 = vmatpush.msra.mxu0 %v348
    %523 = vmatpush.msra.mxu0 %v346
    %524 = vmatpush.msra.mxu0 %v344
    %525 = vmatpush.msra.mxu0 %v342
    %526 = vmatpush.msra.mxu0 %v340
    %527 = vmatpush.msra.mxu0 %v338
    %528 = vmatpush.msra.mxu0 %v336
    %529 = vmatpush.msra.mxu0 %v334
    %530 = vmatpush.msra.mxu0 %v332
    %531 = vmatpush.msra.mxu0 %v330
    %532 = vmatpush.msra.mxu0 %v328
    %533 = vmatpush.msra.mxu0 %v326
    %534 = vmatpush.msra.mxu0 %v324
    %535 = vmatpush.msra.mxu0 %v322
    %536 = vmatmul.f32.gmra.mxu0 %v220
    %v537 = vpop.f32.mrf.mxu0
    %v538 = vadd.f32 %v515, %v537
    %539 = vmatmul.f32.gmra.mxu0 %v224
    %v540 = vpop.f32.mrf.mxu0
    %v541 = vadd.f32 %v518, %v540
    %542 = vdwg.mxu0
    %v543 = vmax.f32 %v446, 0.0
    %v544 = vmax.f32 %v538, 0.0
    %v545 = vmax.f32 %v449, 0.0
    %v546 = vmax.f32 %v541, 0.0
    %v547 = vld [vmem:[%s5] sm:$0x3]
    %v549 = vperm.slane %v547, 0
    %v550 = vperm.slane %v547, 1
    %v553 = vmul.f32 %v543, %v549
    %v554 = vmul.f32 %v544, %v550
    %v555 = vmul.f32 %v545, %v549
    %v556 = vmul.f32 %v546, %v550
    %v557 = vadd.f32 %v553, %v554
    %558 = vadd.xlane.f32.xlu0 %v557
    %v559 = vpop.xlane.xlu0 %558
    %v560 = vadd.f32 %v555, %v556
    %561 = vadd.xlane.f32.xlu0 %v560
    %v562 = vpop.xlane.xlu0 %561
    %v563 = vld [vmem:[#allocation2] sm:$0x1]
    %565 = vset.pattern.permute.xlu0 0
    %566 = vperm.xlu0 %565, %v563
    %v567 = vpop.permute.xlu0 %566
    %v569 = vperm.slane %v567, 0
    %v570 = vadd.f32 %v559, %v569
    %v571 = vadd.f32 %v562, %v569
    %v574 = vlaneseq
    %v575 = vand.u32 %v574, 127
    %v576 = vperm.slane %v570, %v575
    %v577 = vadd.s32 %v575, 4294967288
    %v578 = vperm.slane %v571, %v577
    %vm579 = vcmask 130112
    %v580 = vsel %vm579, %v578, %v576
    %vm582 = vcmask 122880
    %583 = vst.msk [vmem:[#allocation11] sm:$0x1] %vm582, %v580
    // Predicated region
    $region46: #{tpu_custom_call.1} parent=1 // pred_check
      _
    $region47: #{tpu_custom_call.1} parent=1 // pred_check_branch
      %585 = sbr.rel (0) target = $region49
    $region48: #{tpu_custom_call.1} parent=1 // pred_region
      %587 = vsyncadd [#allocation5], 0
      %s589 = sshll.u32 [#allocation11], 4
      %s590 = int_to_ptr.vmem [resolvable:$true] %s589
      %s591 = sshll.u32 %s7, 4
      %s592 = int_to_ptr.hbm [resolvable:$true] %s591
      %594 = dma.vmem_to_hbm [thread:$0]  %s590, 16, %s592, [#allocation5]
    $region49: #{tpu_custom_call.1} parent=1 // pred_fallthru
      _
    // Predicated region
    $region50: #{tpu_custom_call.1} parent=1 // pred_check
      _
    $region51: #{tpu_custom_call.1} parent=1 // pred_check_branch
      %596 = sbr.rel (0) target = $region53
    $region52: #{tpu_custom_call.1} parent=1 // pred_region
      %598 = dma.done [#allocation5], 16
    $region53: #{tpu_custom_call.1} parent=1 // pred_fallthru
      _
    %599 = vsyncpa [#allocation4], 1
    %600 = vsyncpa [#allocation7], 1
    %601 = vsyncpa [#allocation10], 1
    %602 = vsyncpa [#allocation5], 1

</llo_original>
